<compile_context>
chip_gen: v7x
topology: tpu7x:2x2x1
jax: 0.10.0
libtpu: 0.0.40
codegen_flags: <defaults>
</compile_context>

<pallas_src>
import jax
import jax.numpy as jnp
from jax import lax
from jax.experimental import pallas as pl
from jax.experimental.pallas import tpu as pltpu


def _cdiv(a, b):
    return -(-a // b)


def _round_up(n, m):
    return ((n + m - 1) // m) * m


def ctr_kernel(u_ref, c_ref, w1u_ref, w1c_ref, b1_ref, w2_ref, b2_ref,
               w3_ref, b3_ref, o_ref):
    cdt = w1u_ref.dtype                       # matmul operand dtype (f32 or bf16)
    dn = (((1,), (1,)), ((), ()))             # contract last dims: A @ B^T on MXU

    # fc1 (transposed): h1[H, TB] = w1u^T @ u^T + w1c^T @ c^T, f32 accumulation.
    h1 = lax.dot_general(w1u_ref[...], u_ref[...].astype(cdt), dn,
                         preferred_element_type=jnp.float32)
    h1 = h1 + lax.dot_general(w1c_ref[...], c_ref[...].astype(cdt), dn,
                              preferred_element_type=jnp.float32)
    h1 = jnp.maximum(h1 + b1_ref[...], 0.0)               # (H, TB) + (H, 1)

    # fc2 (transposed): h2[H/2, TB] = w2^T @ h1, f32 accumulation.
    h2 = jnp.dot(w2_ref[...], h1.astype(cdt),
                 preferred_element_type=jnp.float32)
    h2 = jnp.maximum(h2 + b2_ref[...], 0.0)               # (HH, TB) + (HH, 1)

    # fc3 (out_features = 1): sublane reduce -> lane-dense (1, TB) row, stored
    # straight into the (1, 1, TB) output block (MXU stays free, no relayout).
    o = jnp.sum(h2 * w3_ref[...], axis=0, keepdims=True) + b3_ref[...]
    o_ref[...] = o.reshape(o_ref.shape).astype(o_ref.dtype)


def ctr_forward(user_interest, candidate_embeddings, params, *,
                block_b=8192, use_bf16=False):
    """CTR MLP forward. Returns [B, 1] f32 scores."""
    B, H = user_interest.shape
    w1, b1, w2, b2, w3, b3 = params
    HH = w2.shape[1]                                      # hidden_dim // 2

    # ---- batch tile selection --------------------------------------------
    if B <= 1024:
        # Small batches: single tile, minimal padding (16 rows packs bf16 pairs).
        align = 16 if (use_bf16 and B >= 16) else 8
        TB = _round_up(B, align)
    else:
        # Large batches: big tiles (multiple of 512) to amortize per-step
        # overhead, but always >= 2 balanced tiles so v7x's two TensorCores
        # both get work on the "parallel" batch axis.
        TB = min(_round_up(block_b, 512), _round_up(_cdiv(B, 2), 512))
    num_tiles = _cdiv(B, TB)

    compute_dtype = jnp.bfloat16 if use_bf16 else jnp.float32

    # Weights pre-transposed for the batch-on-lanes dataflow (tiny arrays).
    w1u_t = w1[:H].T.astype(compute_dtype)                # (H, H)   user half
    w1c_t = w1[H:].T.astype(compute_dtype)                # (H, H)   candidate half
    w2_t = w2.T.astype(compute_dtype)                     # (HH, H)
    b1_col = b1.reshape(H, 1).astype(jnp.float32)         # (H, 1)
    b2_col = b2.reshape(HH, 1).astype(jnp.float32)        # (HH, 1)
    w3_col = w3.reshape(HH, 1).astype(jnp.float32)        # (HH, 1)
    b3_2d = b3.reshape(1, 1).astype(jnp.float32)          # (1, 1)

    def resident(a):                                      # weights stay in VMEM
        return pl.BlockSpec(a.shape, lambda i: (0,) * a.ndim)

    out = pl.pallas_call(
        ctr_kernel,
        out_shape=jax.ShapeDtypeStruct((num_tiles, 1, TB), jnp.float32),
        grid=(num_tiles,),
        in_specs=[
            pl.BlockSpec((TB, H), lambda i: (i, 0)),      # user tile
            pl.BlockSpec((TB, H), lambda i: (i, 0)),      # candidate tile
            resident(w1u_t), resident(w1c_t), resident(b1_col),
            resident(w2_t), resident(b2_col),
            resident(w3_col), resident(b3_2d),
        ],
        out_specs=pl.BlockSpec((1, 1, TB), lambda i: (i, 0, 0)),
        compiler_params=pltpu.CompilerParams(
            dimension_semantics=("parallel",)),           # shards across v7x TCs
    )(user_interest, candidate_embeddings,
      w1u_t, w1c_t, b1_col, w2_t, b2_col, w3_col, b3_2d)

    # Lane-dense (num_tiles, 1, TB) -> [B, 1]; rows >= B (ragged tail) dropped.
    return out.reshape(num_tiles * TB, 1)[:B]


def init_params(key, hidden_dim):
    """Deterministic init matching nn.Linear shapes (W stored as [in, out])."""
    ks = jax.random.split(key, 6)

    def linear(kw, kb, fan_in, fan_out):
        bound = 1.0 / jnp.sqrt(fan_in)
        w = jax.random.uniform(kw, (fan_in, fan_out), jnp.float32, -bound, bound)
        b = jax.random.uniform(kb, (fan_out,), jnp.float32, -bound, bound)
        return w, b

    w1, b1 = linear(ks[0], ks[1], hidden_dim * 2, hidden_dim)
    w2, b2 = linear(ks[2], ks[3], hidden_dim, hidden_dim // 2)
    w3, b3 = linear(ks[4], ks[5], hidden_dim // 2, 1)
    return (w1, b1, w2, b2, w3, b3)


def ctr_reference(u, c, params):
    """Pure-JAX f32 reference (matches the PyTorch module semantics)."""
    w1, b1, w2, b2, w3, b3 = params
    x = jnp.concatenate([u, c], axis=-1)
    x = jnp.maximum(x @ w1 + b1, 0.0)
    x = jnp.maximum(x @ w2 + b2, 0.0)
    return x @ w3 + b3


if __name__ == "__main__":
    H = 32
    key = jax.random.PRNGKey(0)
    k_u, k_c, k_p, k_u2, k_c2 = jax.random.split(key, 5)
    params = init_params(k_p, H)

    # 1) Small batch, single tile, f32 operands.
    B = 8
    user_interest = jax.random.normal(k_u, (B, H), jnp.float32)
    candidate_embeddings = jax.random.normal(k_c, (B, H), jnp.float32)
    ref = ctr_reference(user_interest, candidate_embeddings, params)

    out = jax.block_until_ready(
        ctr_forward(user_interest, candidate_embeddings, params))
    assert out.shape == (B, 1)
    assert jnp.allclose(out, ref, atol=2e-3, rtol=2e-3), "f32 path mismatch"

    # 2) Same inputs through the bf16-MXU path (f32 accumulation), loose tol.
    out_bf = jax.block_until_ready(
        ctr_forward(user_interest, candidate_embeddings, params, use_bf16=True))
    assert jnp.allclose(out_bf, ref, atol=5e-2, rtol=5e-2), "bf16 path mismatch"

    # 3) Larger ragged batch -> grid of 2 balanced tiles, last tile partial
    #    (exercises the no-pad ragged-block path and the multi-tile grid).
    B2 = 2000
    u2 = jax.random.normal(k_u2, (B2, H), jnp.float32)
    c2 = jax.random.normal(k_c2, (B2, H), jnp.float32)
    ref2 = ctr_reference(u2, c2, params)
    out2 = jax.block_until_ready(ctr_forward(u2, c2, params))
    assert out2.shape == (B2, 1)
    assert jnp.allclose(out2, ref2, atol=2e-3, rtol=2e-3), "tiled path mismatch"

    print("KERNEL_OK")
</pallas_src>

<mosaic_0001>
module attributes {stable_mosaic.version = 11 : i64} {
  func.func @ctr_kernel(%arg0: i32, %arg1: memref<8x32xf32, #tpu.memory_space<vmem>>, %arg2: memref<8x32xf32, #tpu.memory_space<vmem>>, %arg3: memref<32x32xf32, #tpu.memory_space<vmem>>, %arg4: memref<32x32xf32, #tpu.memory_space<vmem>>, %arg5: memref<32x1xf32, #tpu.memory_space<vmem>>, %arg6: memref<16x32xf32, #tpu.memory_space<vmem>>, %arg7: memref<16x1xf32, #tpu.memory_space<vmem>>, %arg8: memref<16x1xf32, #tpu.memory_space<vmem>>, %arg9: memref<1x1xf32, #tpu.memory_space<vmem>>, %arg10: memref<1x1x8xf32, #tpu.memory_space<vmem>>) attributes {dimension_semantics = [#tpu.dimension_semantics<parallel>], iteration_bounds = array<i64: 1>, scalar_prefetch = 0 : i64, scratch_operands = 0 : i64, tpu.core_type = #tpu.core_type<tc>, window_params = [{transform_indices = @transform_0, window_bounds = array<i64: 8, 32>}, {transform_indices = @transform_1, window_bounds = array<i64: 8, 32>}, {pipeline_mode = #tpu.pipeline_mode<synchronous>, transform_indices = @transform_2, window_bounds = array<i64: 32, 32>}, {pipeline_mode = #tpu.pipeline_mode<synchronous>, transform_indices = @transform_3, window_bounds = array<i64: 32, 32>}, {pipeline_mode = #tpu.pipeline_mode<synchronous>, transform_indices = @transform_4, window_bounds = array<i64: 32, 1>}, {pipeline_mode = #tpu.pipeline_mode<synchronous>, transform_indices = @transform_5, window_bounds = array<i64: 16, 32>}, {pipeline_mode = #tpu.pipeline_mode<synchronous>, transform_indices = @transform_6, window_bounds = array<i64: 16, 1>}, {pipeline_mode = #tpu.pipeline_mode<synchronous>, transform_indices = @transform_7, window_bounds = array<i64: 16, 1>}, {pipeline_mode = #tpu.pipeline_mode<synchronous>, transform_indices = @transform_8, window_bounds = array<i64: 1, 1>}, {transform_indices = @transform_9, window_bounds = array<i64: 1, 1, 8>}]} {
    %c0 = arith.constant 0 : index
    %c0_0 = arith.constant 0 : index
    %0 = vector.load %arg3[%c0, %c0_0] : memref<32x32xf32, #tpu.memory_space<vmem>>, vector<32x32xf32>
    %c0_1 = arith.constant 0 : index
    %c0_2 = arith.constant 0 : index
    %1 = vector.load %arg1[%c0_1, %c0_2] : memref<8x32xf32, #tpu.memory_space<vmem>>, vector<8x32xf32>
    %cst = arith.constant dense<0.000000e+00> : vector<32x8xf32>
    %2 = tpu.matmul %0, %1, %cst {dimension_numbers = #tpu.dot_dimension_numbers<[1], [1], [0], [0], [0, 0, 1, 0], [], []>} : vector<32x32xf32>, vector<8x32xf32>, vector<32x8xf32> -> vector<32x8xf32>
    %c0_3 = arith.constant 0 : index
    %c0_4 = arith.constant 0 : index
    %3 = vector.load %arg4[%c0_3, %c0_4] : memref<32x32xf32, #tpu.memory_space<vmem>>, vector<32x32xf32>
    %c0_5 = arith.constant 0 : index
    %c0_6 = arith.constant 0 : index
    %4 = vector.load %arg2[%c0_5, %c0_6] : memref<8x32xf32, #tpu.memory_space<vmem>>, vector<8x32xf32>
    %cst_7 = arith.constant dense<0.000000e+00> : vector<32x8xf32>
    %5 = tpu.matmul %3, %4, %cst_7 {dimension_numbers = #tpu.dot_dimension_numbers<[1], [1], [0], [0], [0, 0, 1, 0], [], []>} : vector<32x32xf32>, vector<8x32xf32>, vector<32x8xf32> -> vector<32x8xf32>
    %6 = arith.addf %2, %5 : vector<32x8xf32>
    %c0_8 = arith.constant 0 : index
    %c0_9 = arith.constant 0 : index
    %7 = vector.load %arg5[%c0_8, %c0_9] : memref<32x1xf32, #tpu.memory_space<vmem>>, vector<32x1xf32>
    %8 = vector.broadcast %7 : vector<32x1xf32> to vector<32x8xf32>
    %9 = arith.addf %6, %8 : vector<32x8xf32>
    %cst_10 = arith.constant 0.000000e+00 : f32
    %10 = vector.broadcast %cst_10 : f32 to vector<32x8xf32>
    %11 = arith.maximumf %9, %10 : vector<32x8xf32>
    %c0_11 = arith.constant 0 : index
    %c0_12 = arith.constant 0 : index
    %12 = vector.load %arg6[%c0_11, %c0_12] : memref<16x32xf32, #tpu.memory_space<vmem>>, vector<16x32xf32>
    %cst_13 = arith.constant dense<0.000000e+00> : vector<16x8xf32>
    %13 = tpu.matmul %12, %11, %cst_13 {dimension_numbers = #tpu.dot_dimension_numbers<[1], [0], [0], [1], [0, 0, 1, 1], [], []>} : vector<16x32xf32>, vector<32x8xf32>, vector<16x8xf32> -> vector<16x8xf32>
    %c0_14 = arith.constant 0 : index
    %c0_15 = arith.constant 0 : index
    %14 = vector.load %arg7[%c0_14, %c0_15] : memref<16x1xf32, #tpu.memory_space<vmem>>, vector<16x1xf32>
    %15 = vector.broadcast %14 : vector<16x1xf32> to vector<16x8xf32>
    %16 = arith.addf %13, %15 : vector<16x8xf32>
    %cst_16 = arith.constant 0.000000e+00 : f32
    %17 = vector.broadcast %cst_16 : f32 to vector<16x8xf32>
    %18 = arith.maximumf %16, %17 : vector<16x8xf32>
    %c0_17 = arith.constant 0 : index
    %c0_18 = arith.constant 0 : index
    %19 = vector.load %arg8[%c0_17, %c0_18] : memref<16x1xf32, #tpu.memory_space<vmem>>, vector<16x1xf32>
    %20 = vector.broadcast %19 : vector<16x1xf32> to vector<16x8xf32>
    %21 = arith.mulf %18, %20 : vector<16x8xf32>
    %cst_19 = arith.constant dense<0.000000e+00> : vector<8xf32>
    %22 = vector.multi_reduction <add>, %21, %cst_19 [0] : vector<16x8xf32> to vector<8xf32>
    %23 = vector.shape_cast %22 : vector<8xf32> to vector<1x8xf32>
    %c0_20 = arith.constant 0 : index
    %c0_21 = arith.constant 0 : index
    %24 = vector.load %arg9[%c0_20, %c0_21] : memref<1x1xf32, #tpu.memory_space<vmem>>, vector<1x1xf32>
    %25 = vector.broadcast %24 : vector<1x1xf32> to vector<1x8xf32>
    %26 = arith.addf %23, %25 : vector<1x8xf32>
    %27 = vector.shape_cast %26 : vector<1x8xf32> to vector<1x1x8xf32>
    %c0_22 = arith.constant 0 : index
    %c0_23 = arith.constant 0 : index
    %c0_24 = arith.constant 0 : index
    %28 = vector.load %arg10[%c0_22, %c0_23, %c0_24] : memref<1x1x8xf32, #tpu.memory_space<vmem>>, vector<1x1x8xf32>
    tpu.vector_store %arg10[%c0_22, %c0_23, %c0_24], %27 {strides = array<i32>} : memref<1x1x8xf32, #tpu.memory_space<vmem>>, vector<1x1x8xf32>,
    return
  }
  func.func @transform_0(%arg0: i32) -> (i32, i32) {
    %c0_i32 = arith.constant 0 : i32
    %c0_i32_0 = arith.constant 0 : i32
    return %arg0, %c0_i32 : i32, i32
  }
  func.func @transform_1(%arg0: i32) -> (i32, i32) {
    %c0_i32 = arith.constant 0 : i32
    %c0_i32_0 = arith.constant 0 : i32
    return %arg0, %c0_i32 : i32, i32
  }
  func.func @transform_2(%arg0: i32) -> (i32, i32) {
    %c0_i32 = arith.constant 0 : i32
    %c0_i32_0 = arith.constant 0 : i32
    %c0_i32_1 = arith.constant 0 : i32
    return %c0_i32, %c0_i32_0 : i32, i32
  }
  func.func @transform_3(%arg0: i32) -> (i32, i32) {
    %c0_i32 = arith.constant 0 : i32
    %c0_i32_0 = arith.constant 0 : i32
    %c0_i32_1 = arith.constant 0 : i32
    return %c0_i32, %c0_i32_0 : i32, i32
  }
  func.func @transform_4(%arg0: i32) -> (i32, i32) {
    %c0_i32 = arith.constant 0 : i32
    %c0_i32_0 = arith.constant 0 : i32
    %c0_i32_1 = arith.constant 0 : i32
    return %c0_i32, %c0_i32_0 : i32, i32
  }
  func.func @transform_5(%arg0: i32) -> (i32, i32) {
    %c0_i32 = arith.constant 0 : i32
    %c0_i32_0 = arith.constant 0 : i32
    %c0_i32_1 = arith.constant 0 : i32
    return %c0_i32, %c0_i32_0 : i32, i32
  }
  func.func @transform_6(%arg0: i32) -> (i32, i32) {
    %c0_i32 = arith.constant 0 : i32
    %c0_i32_0 = arith.constant 0 : i32
    %c0_i32_1 = arith.constant 0 : i32
    return %c0_i32, %c0_i32_0 : i32, i32
  }
  func.func @transform_7(%arg0: i32) -> (i32, i32) {
    %c0_i32 = arith.constant 0 : i32
    %c0_i32_0 = arith.constant 0 : i32
    %c0_i32_1 = arith.constant 0 : i32
    return %c0_i32, %c0_i32_0 : i32, i32
  }
  func.func @transform_8(%arg0: i32) -> (i32, i32) {
    %c0_i32 = arith.constant 0 : i32
    %c0_i32_0 = arith.constant 0 : i32
    %c0_i32_1 = arith.constant 0 : i32
    return %c0_i32, %c0_i32_0 : i32, i32
  }
  func.func @transform_9(%arg0: i32) -> (i32, i32, i32) {
    %c0_i32 = arith.constant 0 : i32
    %c0_i32_0 = arith.constant 0 : i32
    %c0_i32_1 = arith.constant 0 : i32
    return %arg0, %c0_i32, %c0_i32_0 : i32, i32, i32
  }
}

</mosaic_0001>

<llo_original>
// kernel: tpu_custom_call.1
$region0: #{tpu_custom_call.1}
  #allocation0 [shape = 'u32[]', space=smem, size = 0x4, offset = 0x4, fixed_abs, tag = 'smem constant byte address 0x4 - core index']
  #allocation1 [shape = 'u32[144,128]{1,0:T(1,128)}', space=vmem, size = 0x12000, scoped, tag = 'internal scratch']
  #allocation2 [shape = 'f32[1,1]{1,0:T(1,128)S(1)}', space=vmem, size = 0x200, scoped, tag = 'scoped memory for tpu_custom_call.1']
  %s0 = inlined_call_operand.hbm [shape: f32[8,32], index: 0, kind: input, shape index: {}]
  %s1 = inlined_call_operand.hbm [shape: f32[8,32], index: 1, kind: input, shape index: {}]
  %s2 = inlined_call_operand.vmem [shape: f32[32,32], index: 2, kind: input, shape index: {}]
  %s3 = inlined_call_operand.vmem [shape: f32[32,32], index: 3, kind: input, shape index: {}]
  %s4 = inlined_call_operand.vmem [shape: f32[32,1], index: 4, kind: input, shape index: {}]
  %s5 = inlined_call_operand.vmem [shape: f32[16,32], index: 5, kind: input, shape index: {}]
  %s6 = inlined_call_operand.vmem [shape: f32[16,1], index: 6, kind: input, shape index: {}]
  %s7 = inlined_call_operand.vmem [shape: f32[16,1], index: 7, kind: input, shape index: {}]
  %s8 = inlined_call_operand.<no memory space> [shape: f32[1,1], index: 8, kind: input, shape index: {}]
  %s9 = inlined_call_operand.hbm [shape: f32[1,1,8], index: 9, kind: output, shape index: {}]
  %s10 = sld [smem:[#allocation0]]
  $region54: #{tpu_custom_call.1} parent=0
    _
  %s12 = ssub.s32 1, %s10
  %s13 = scalar_select 0, %s12, %s10
  %v14 = vstv %s8
  %15 = vst [vmem:[#allocation2] sm:$0x1] %v14
  $region1: #{tpu_custom_call.1} parent=0
    #allocation3 [shape = 'u8[4096]{0}', space=vmem, size = 0x1000, scoped, tag = 'input window, operand 0, single buffered']
    #allocation4 [shape = 's32[1]{0}', space=sflag, size = 0x4, scoped, tag = 'scoped memory for tpu_custom_call.1']
    #allocation5 [shape = 's32[1]{0}', space=sflag, size = 0x4, scoped, tag = 'scoped memory for tpu_custom_call.1']
    #allocation6 [shape = 'u8[4096]{0}', space=vmem, size = 0x1000, scoped, tag = 'input window, operand 1, single buffered']
    #allocation7 [shape = 's32[1]{0}', space=sflag, size = 0x4, scoped, tag = 'scoped memory for tpu_custom_call.1']
    #allocation8 [shape = 'u8[512]{0}', space=vmem, size = 0x400, scoped, tag = 'output window, operand 0, single buffered']
    %16 = vsyncpa [#allocation4], 0
    %17 = vsyncpa [#allocation7], 0
    %18 = vsyncpa [#allocation5], 0
    // Predicated region
    $region2: #{tpu_custom_call.1} parent=1 // pred_check
      _
    $region3: #{tpu_custom_call.1} parent=1 // pred_check_branch
      %20 = sbr.rel (0) target = $region5
    $region4: #{tpu_custom_call.1} parent=1 // pred_region
      %s22 = ssub.s32 128, 128
      %23 = vsyncadd [#allocation4], %s22
      %s25 = sshll.u32 [#allocation3], 4
      %s26 = int_to_ptr.vmem [resolvable:$true] %s25
      %28 = dma.hbm_to_vmem [thread:$0]  %s0, 128, %s26, [#allocation4]
    $region5: #{tpu_custom_call.1} parent=1 // pred_fallthru
      _
    // Predicated region
    $region6: #{tpu_custom_call.1} parent=1 // pred_check
      _
    $region7: #{tpu_custom_call.1} parent=1 // pred_check_branch
      %30 = sbr.rel (0) target = $region9
    $region8: #{tpu_custom_call.1} parent=1 // pred_region
      %s32 = ssub.s32 128, 128
      %33 = vsyncadd [#allocation7], %s32
      %s35 = sshll.u32 [#allocation6], 4
      %s36 = int_to_ptr.vmem [resolvable:$true] %s35
      %38 = dma.hbm_to_vmem [thread:$0]  %s1, 128, %s36, [#allocation7]
    $region9: #{tpu_custom_call.1} parent=1 // pred_fallthru
      _
    // Predicated region
    $region10: #{tpu_custom_call.1} parent=1 // pred_check
      _
    $region11: #{tpu_custom_call.1} parent=1 // pred_check_branch
      %40 = sbr.rel (0) target = $region13
    $region12: #{tpu_custom_call.1} parent=1 // pred_region
      _
    $region13: #{tpu_custom_call.1} parent=1 // pred_fallthru
      _
    // Predicated region
    $region14: #{tpu_custom_call.1} parent=1 // pred_check
      _
    $region15: #{tpu_custom_call.1} parent=1 // pred_check_branch
      %42 = sbr.rel (0) target = $region17
    $region16: #{tpu_custom_call.1} parent=1 // pred_region
      _
    $region17: #{tpu_custom_call.1} parent=1 // pred_fallthru
      _
    // Predicated region
    $region18: #{tpu_custom_call.1} parent=1 // pred_check
      _
    $region19: #{tpu_custom_call.1} parent=1 // pred_check_branch
      %44 = sbr.rel (0) target = $region21
    $region20: #{tpu_custom_call.1} parent=1 // pred_region
      _
    $region21: #{tpu_custom_call.1} parent=1 // pred_fallthru
      _
    // Predicated region
    $region22: #{tpu_custom_call.1} parent=1 // pred_check
      _
    $region23: #{tpu_custom_call.1} parent=1 // pred_check_branch
      %46 = sbr.rel (0) target = $region25
    $region24: #{tpu_custom_call.1} parent=1 // pred_region
      _
    $region25: #{tpu_custom_call.1} parent=1 // pred_fallthru
      _
    // Predicated region
    $region26: #{tpu_custom_call.1} parent=1 // pred_check
      _
    $region27: #{tpu_custom_call.1} parent=1 // pred_check_branch
      %48 = sbr.rel (0) target = $region29
    $region28: #{tpu_custom_call.1} parent=1 // pred_region
      _
    $region29: #{tpu_custom_call.1} parent=1 // pred_fallthru
      _
    // Predicated region
    $region30: #{tpu_custom_call.1} parent=1 // pred_check
      _
    $region31: #{tpu_custom_call.1} parent=1 // pred_check_branch
      %50 = sbr.rel (0) target = $region33
    $region32: #{tpu_custom_call.1} parent=1 // pred_region
      _
    $region33: #{tpu_custom_call.1} parent=1 // pred_fallthru
      _
    // Predicated region
    $region34: #{tpu_custom_call.1} parent=1 // pred_check
      _
    $region35: #{tpu_custom_call.1} parent=1 // pred_check_branch
      %52 = sbr.rel (0) target = $region37
    $region36: #{tpu_custom_call.1} parent=1 // pred_region
      _
    $region37: #{tpu_custom_call.1} parent=1 // pred_fallthru
      _
    // Predicated region
    $region38: #{tpu_custom_call.1} parent=1 // pred_check
      _
    $region39: #{tpu_custom_call.1} parent=1 // pred_check_branch
      %54 = sbr.rel (0) target = $region41
    $region40: #{tpu_custom_call.1} parent=1 // pred_region
      %55 = dma.done [#allocation4], 128
    $region41: #{tpu_custom_call.1} parent=1 // pred_fallthru
      _
    // Predicated region
    $region42: #{tpu_custom_call.1} parent=1 // pred_check
      _
    $region43: #{tpu_custom_call.1} parent=1 // pred_check_branch
      %57 = sbr.rel (0) target = $region45
    $region44: #{tpu_custom_call.1} parent=1 // pred_region
      %58 = dma.done [#allocation7], 128
    $region45: #{tpu_custom_call.1} parent=1 // pred_fallthru
      _
    %v59 = vld [vmem:[%s2] sm:$0xff]
    %v60 = vld [vmem:[%s2 + $0x8] sm:$0xff]
    %v61 = vld [vmem:[%s2 + $0x10] sm:$0xff]
    %v62 = vld [vmem:[%s2 + $0x18] sm:$0xff]
    %v63 = vld [vmem:[#allocation3] sm:$0xff]
    %v64 = vld [vmem:[%s3] sm:$0xff]
    %v65 = vld [vmem:[%s3 + $0x8] sm:$0xff]
    %v66 = vld [vmem:[%s3 + $0x10] sm:$0xff]
    %v67 = vld [vmem:[%s3 + $0x18] sm:$0xff]
    %v68 = vld [vmem:[#allocation6] sm:$0xff]
    %vm69 = vcmask 261120
    %v71 = vsel %vm69, %v64, 0
    %v74 = vsel %vm69, %v65, 0
    %v77 = vsel %vm69, %v66, 0
    %v80 = vsel %vm69, %v67, 0
    %v83 = vsel %vm69, %v68, 0
    %85 = vmatprep.subr.mxu0 0.0
    %86 = vmatpush1.xpose.msra.mxu0 %v83
    %87 = vmatprep.subr.mxu0 0.0
    %88 = vmatpush1.xpose.msra.mxu0 0.0
    %89 = vmatprep.subr.mxu0 0.0
    %90 = vmatpush1.xpose.msra.mxu0 0.0
    %91 = vmatprep.subr.mxu0 0.0
    %92 = vmatpush1.xpose.msra.mxu0 0.0
    %93 = vmatprep.subr.mxu0 0.0
    %94 = vmatpush1.xpose.msra.mxu0 0.0
    %95 = vmatprep.subr.mxu0 0.0
    %96 = vmatpush1.xpose.msra.mxu0 0.0
    %97 = vmatprep.subr.mxu0 0.0
    %98 = vmatpush1.xpose.msra.mxu0 0.0
    %99 = vmatprep.subr.mxu0 0.0
    %100 = vmatpush1.xpose.msra.mxu0 0.0
    %101 = vmatprep.subr.mxu0 0.0
    %102 = vmatpush1.xpose.msra.mxu0 0.0
    %103 = vmatprep.subr.mxu0 0.0
    %104 = vmatpush1.xpose.msra.mxu0 0.0
    %105 = vmatprep.subr.mxu0 0.0
    %106 = vmatpush1.xpose.msra.mxu0 0.0
    %107 = vmatprep.subr.mxu0 0.0
    %108 = vmatpush1.xpose.msra.mxu0 0.0
    %109 = vmatprep.subr.mxu0 0.0
    %110 = vmatpush1.xpose.msra.mxu0 0.0
    %111 = vmatprep.subr.mxu0 0.0
    %112 = vmatpush1.xpose.msra.mxu0 0.0
    %113 = vmatprep.subr.mxu0 0.0
    %114 = vmatpush1.xpose.msra.mxu0 0.0
    %115 = vmatprep.subr.mxu0 0.0
    %116 = vmatpush1.xpose.msra.mxu0 0.0
    %117 = vmatprep.subr.mxu0 0.0
    %118 = vmatpush1.xpose.msra.mxu0 0.0
    %119 = vmatprep.subr.mxu0 0.0
    %120 = vmatpush1.xpose.msra.mxu0 0.0
    %121 = vmatprep.subr.mxu0 0.0
    %122 = vmatpush1.xpose.msra.mxu0 0.0
    %123 = vmatprep.subr.mxu0 0.0
    %124 = vmatpush1.xpose.msra.mxu0 0.0
    %125 = vmatprep.subr.mxu0 0.0
    %126 = vmatpush1.xpose.msra.mxu0 0.0
    %127 = vmatprep.subr.mxu0 0.0
    %128 = vmatpush1.xpose.msra.mxu0 0.0
    %129 = vmatprep.subr.mxu0 0.0
    %130 = vmatpush1.xpose.msra.mxu0 0.0
    %131 = vmatprep.subr.mxu0 0.0
    %132 = vmatpush1.xpose.msra.mxu0 0.0
    %133 = vmatprep.subr.mxu0 0.0
    %134 = vmatpush1.xpose.msra.mxu0 0.0
    %135 = vmatprep.subr.mxu0 0.0
    %136 = vmatpush1.xpose.msra.mxu0 0.0
    %137 = vmatprep.subr.mxu0 0.0
    %138 = vmatpush1.xpose.msra.mxu0 0.0
    %139 = vmatprep.subr.mxu0 0.0
    %140 = vmatpush1.xpose.msra.mxu0 0.0
    %141 = vmatprep.subr.mxu0 0.0
    %142 = vmatpush1.xpose.msra.mxu0 0.0
    %143 = vmatprep.subr.mxu0 0.0
    %144 = vmatpush1.xpose.msra.mxu0 0.0
    %145 = vmatprep.subr.mxu0 0.0
    %146 = vmatpush1.xpose.msra.mxu0 0.0
    %147 = vmatprep.subr.mxu0 0.0
    %148 = vmatpush1.xpose.msra.mxu0 0.0
    %149 = vmatprep.mubr.f32.mxu0 0.0
    %150 = vmatmul.mubr.f32.gmra.mrb[0].mxu0 %v71
    %v151 = vpop.f32.mrb[0].mxu0
    %v152 = vadd.f32 0.0, %v151
    %v153 = vpop.f32.mrb[0].mxu0
    %154 = vmatprep.mubr.f32.mxu0 0.0
    %155 = vmatmul.mubr.f32.gmra.mrb[0].mxu0 %v74
    %v156 = vpop.f32.mrb[0].mxu0
    %v157 = vadd.f32 0.0, %v156
    %v158 = vpop.f32.mrb[0].mxu0
    %159 = vmatprep.mubr.f32.mxu0 0.0
    %160 = vmatmul.mubr.f32.gmra.mrb[0].mxu0 %v77
    %v161 = vpop.f32.mrb[0].mxu0
    %v162 = vadd.f32 0.0, %v161
    %v163 = vpop.f32.mrb[0].mxu0
    %164 = vmatprep.mubr.f32.mxu0 0.0
    %165 = vmatmul.mubr.f32.gmra.mrb[0].mxu0 %v80
    %v166 = vpop.f32.mrb[0].mxu0
    %v167 = vadd.f32 0.0, %v166
    %v168 = vpop.f32.mrb[0].mxu0
    %169 = vdwg.mxu0
    %v171 = vsel %vm69, %v59, 0
    %v174 = vsel %vm69, %v60, 0
    %v177 = vsel %vm69, %v61, 0
    %v180 = vsel %vm69, %v62, 0
    %v183 = vsel %vm69, %v63, 0
    %185 = vmatprep.subr.mxu0 0.0
    %186 = vmatpush1.xpose.msra.mxu0 %v183
    %187 = vmatprep.subr.mxu0 0.0
    %188 = vmatpush1.xpose.msra.mxu0 0.0
    %189 = vmatprep.subr.mxu0 0.0
    %190 = vmatpush1.xpose.msra.mxu0 0.0
    %191 = vmatprep.subr.mxu0 0.0
    %192 = vmatpush1.xpose.msra.mxu0 0.0
    %193 = vmatprep.subr.mxu0 0.0
    %194 = vmatpush1.xpose.msra.mxu0 0.0
    %195 = vmatprep.subr.mxu0 0.0
    %196 = vmatpush1.xpose.msra.mxu0 0.0
    %197 = vmatprep.subr.mxu0 0.0
    %198 = vmatpush1.xpose.msra.mxu0 0.0
    %199 = vmatprep.subr.mxu0 0.0
    %200 = vmatpush1.xpose.msra.mxu0 0.0
    %201 = vmatprep.subr.mxu0 0.0
    %202 = vmatpush1.xpose.msra.mxu0 0.0
    %203 = vmatprep.subr.mxu0 0.0
    %204 = vmatpush1.xpose.msra.mxu0 0.0
    %205 = vmatprep.subr.mxu0 0.0
    %206 = vmatpush1.xpose.msra.mxu0 0.0
    %207 = vmatprep.subr.mxu0 0.0
    %208 = vmatpush1.xpose.msra.mxu0 0.0
    %209 = vmatprep.subr.mxu0 0.0
    %210 = vmatpush1.xpose.msra.mxu0 0.0
    %211 = vmatprep.subr.mxu0 0.0
    %212 = vmatpush1.xpose.msra.mxu0 0.0
    %213 = vmatprep.subr.mxu0 0.0
    %214 = vmatpush1.xpose.msra.mxu0 0.0
    %215 = vmatprep.subr.mxu0 0.0
    %216 = vmatpush1.xpose.msra.mxu0 0.0
    %217 = vmatprep.subr.mxu0 0.0
    %218 = vmatpush1.xpose.msra.mxu0 0.0
    %219 = vmatprep.subr.mxu0 0.0
    %220 = vmatpush1.xpose.msra.mxu0 0.0
    %221 = vmatprep.subr.mxu0 0.0
    %222 = vmatpush1.xpose.msra.mxu0 0.0
    %223 = vmatprep.subr.mxu0 0.0
    %224 = vmatpush1.xpose.msra.mxu0 0.0
    %225 = vmatprep.subr.mxu0 0.0
    %226 = vmatpush1.xpose.msra.mxu0 0.0
    %227 = vmatprep.subr.mxu0 0.0
    %228 = vmatpush1.xpose.msra.mxu0 0.0
    %229 = vmatprep.subr.mxu0 0.0
    %230 = vmatpush1.xpose.msra.mxu0 0.0
    %231 = vmatprep.subr.mxu0 0.0
    %232 = vmatpush1.xpose.msra.mxu0 0.0
    %233 = vmatprep.subr.mxu0 0.0
    %234 = vmatpush1.xpose.msra.mxu0 0.0
    %235 = vmatprep.subr.mxu0 0.0
    %236 = vmatpush1.xpose.msra.mxu0 0.0
    %237 = vmatprep.subr.mxu0 0.0
    %238 = vmatpush1.xpose.msra.mxu0 0.0
    %239 = vmatprep.subr.mxu0 0.0
    %240 = vmatpush1.xpose.msra.mxu0 0.0
    %241 = vmatprep.subr.mxu0 0.0
    %242 = vmatpush1.xpose.msra.mxu0 0.0
    %243 = vmatprep.subr.mxu0 0.0
    %244 = vmatpush1.xpose.msra.mxu0 0.0
    %245 = vmatprep.subr.mxu0 0.0
    %246 = vmatpush1.xpose.msra.mxu0 0.0
    %247 = vmatprep.subr.mxu0 0.0
    %248 = vmatpush1.xpose.msra.mxu0 0.0
    %249 = vmatprep.mubr.f32.mxu0 0.0
    %250 = vmatmul.mubr.f32.gmra.mrb[0].mxu0 %v171
    %v251 = vpop.f32.mrb[0].mxu0
    %v252 = vadd.f32 %v152, %v251
    %v253 = vpop.f32.mrb[0].mxu0
    %254 = vmatprep.mubr.f32.mxu0 0.0
    %255 = vmatmul.mubr.f32.gmra.mrb[0].mxu0 %v174
    %v256 = vpop.f32.mrb[0].mxu0
    %v257 = vadd.f32 %v157, %v256
    %v258 = vpop.f32.mrb[0].mxu0
    %259 = vmatprep.mubr.f32.mxu0 0.0
    %260 = vmatmul.mubr.f32.gmra.mrb[0].mxu0 %v177
    %v261 = vpop.f32.mrb[0].mxu0
    %v262 = vadd.f32 %v162, %v261
    %v263 = vpop.f32.mrb[0].mxu0
    %264 = vmatprep.mubr.f32.mxu0 0.0
    %265 = vmatmul.mubr.f32.gmra.mrb[0].mxu0 %v180
    %v266 = vpop.f32.mrb[0].mxu0
    %v267 = vadd.f32 %v167, %v266
    %v268 = vpop.f32.mrb[0].mxu0
    %269 = vdwg.mxu0
    %v270 = vld [vmem:[%s4] sm:$0xff]
    %v271 = vld [vmem:[%s4 + $0x8] sm:$0xff]
    %v272 = vld [vmem:[%s4 + $0x10] sm:$0xff]
    %v273 = vld [vmem:[%s4 + $0x18] sm:$0xff]
    %275 = vset.pattern.permute.xlu0 0
    %276 = vperm.xlu0 %275, %v270
    %v277 = vpop.permute.xlu0 %276
    %280 = vset.pattern.permute.xlu0 0
    %281 = vperm.xlu0 %280, %v271
    %v282 = vpop.permute.xlu0 %281
    %285 = vset.pattern.permute.xlu0 0
    %286 = vperm.xlu0 %285, %v272
    %v287 = vpop.permute.xlu0 %286
    %290 = vset.pattern.permute.xlu0 0
    %291 = vperm.xlu0 %290, %v273
    %v292 = vpop.permute.xlu0 %291
    %v294 = vadd.f32 %v252, %v277
    %v295 = vadd.f32 %v257, %v282
    %v296 = vadd.f32 %v262, %v287
    %v297 = vadd.f32 %v267, %v292
    %v298 = vmax.f32 %v294, 0.0
    %v299 = vmax.f32 %v295, 0.0
    %v300 = vmax.f32 %v296, 0.0
    %v301 = vmax.f32 %v297, 0.0
    %v302 = vld [vmem:[%s5] sm:$0xff]
    %v303 = vld [vmem:[%s5 + $0x8] sm:$0xff]
    %v304 = vld [vmem:[%s6] sm:$0xff]
    %v305 = vld [vmem:[%s6 + $0x8] sm:$0xff]
    %307 = vset.pattern.permute.xlu0 0
    %308 = vperm.xlu0 %307, %v304
    %v309 = vpop.permute.xlu0 %308
    %312 = vset.pattern.permute.xlu0 0
    %313 = vperm.xlu0 %312, %v305
    %v314 = vpop.permute.xlu0 %313
    %v317 = vsel %vm69, %v302, 0
    %v320 = vsel %vm69, %v303, 0
    %322 = vmatprep.subr.mxu0 0.0
    %323 = vmatpush1.msra.mxu0 %v298
    %324 = vmatprep.subr.mxu0 0.0
    %325 = vmatpush1.msra.mxu0 %v299
    %326 = vmatprep.subr.mxu0 0.0
    %327 = vmatpush1.msra.mxu0 %v300
    %328 = vmatprep.subr.mxu0 0.0
    %329 = vmatpush1.msra.mxu0 %v301
    %330 = vmatprep.subr.mxu0 0.0
    %331 = vmatpush1.msra.mxu0 0.0
    %332 = vmatprep.subr.mxu0 0.0
    %333 = vmatpush1.msra.mxu0 0.0
    %334 = vmatprep.subr.mxu0 0.0
    %335 = vmatpush1.msra.mxu0 0.0
    %336 = vmatprep.subr.mxu0 0.0
    %337 = vmatpush1.msra.mxu0 0.0
    %338 = vmatprep.subr.mxu0 0.0
    %339 = vmatpush1.msra.mxu0 0.0
    %340 = vmatprep.subr.mxu0 0.0
    %341 = vmatpush1.msra.mxu0 0.0
    %342 = vmatprep.subr.mxu0 0.0
    %343 = vmatpush1.msra.mxu0 0.0
    %344 = vmatprep.subr.mxu0 0.0
    %345 = vmatpush1.msra.mxu0 0.0
    %346 = vmatprep.subr.mxu0 0.0
    %347 = vmatpush1.msra.mxu0 0.0
    %348 = vmatprep.subr.mxu0 0.0
    %349 = vmatpush1.msra.mxu0 0.0
    %350 = vmatprep.subr.mxu0 0.0
    %351 = vmatpush1.msra.mxu0 0.0
    %352 = vmatprep.subr.mxu0 0.0
    %353 = vmatpush1.msra.mxu0 0.0
    %354 = vmatprep.subr.mxu0 0.0
    %355 = vmatpush1.msra.mxu0 0.0
    %356 = vmatprep.subr.mxu0 0.0
    %357 = vmatpush1.msra.mxu0 0.0
    %358 = vmatprep.subr.mxu0 0.0
    %359 = vmatpush1.msra.mxu0 0.0
    %360 = vmatprep.subr.mxu0 0.0
    %361 = vmatpush1.msra.mxu0 0.0
    %362 = vmatprep.subr.mxu0 0.0
    %363 = vmatpush1.msra.mxu0 0.0
    %364 = vmatprep.subr.mxu0 0.0
    %365 = vmatpush1.msra.mxu0 0.0
    %366 = vmatprep.subr.mxu0 0.0
    %367 = vmatpush1.msra.mxu0 0.0
    %368 = vmatprep.subr.mxu0 0.0
    %369 = vmatpush1.msra.mxu0 0.0
    %370 = vmatprep.subr.mxu0 0.0
    %371 = vmatpush1.msra.mxu0 0.0
    %372 = vmatprep.subr.mxu0 0.0
    %373 = vmatpush1.msra.mxu0 0.0
    %374 = vmatprep.subr.mxu0 0.0
    %375 = vmatpush1.msra.mxu0 0.0
    %376 = vmatprep.subr.mxu0 0.0
    %377 = vmatpush1.msra.mxu0 0.0
    %378 = vmatprep.subr.mxu0 0.0
    %379 = vmatpush1.msra.mxu0 0.0
    %380 = vmatprep.subr.mxu0 0.0
    %381 = vmatpush1.msra.mxu0 0.0
    %382 = vmatprep.subr.mxu0 0.0
    %383 = vmatpush1.msra.mxu0 0.0
    %384 = vmatprep.subr.mxu0 0.0
    %385 = vmatpush1.msra.mxu0 0.0
    %386 = vmatprep.mubr.f32.mxu0 0.0
    %387 = vmatmul.mubr.f32.gmra.mrb[0].mxu0 %v317
    %v388 = vpop.f32.mrb[0].mxu0
    %v389 = vadd.f32 %v309, %v388
    %v390 = vpop.f32.mrb[0].mxu0
    %391 = vmatprep.mubr.f32.mxu0 0.0
    %392 = vmatmul.mubr.f32.gmra.mrb[0].mxu0 %v320
    %v393 = vpop.f32.mrb[0].mxu0
    %v394 = vadd.f32 %v314, %v393
    %v395 = vpop.f32.mrb[0].mxu0
    %396 = vdwg.mxu0
    %v397 = vmax.f32 %v389, 0.0
    %v398 = vmax.f32 %v394, 0.0
    %v399 = vld [vmem:[%s7] sm:$0xff]
    %v400 = vld [vmem:[%s7 + $0x8] sm:$0xff]
    %402 = vset.pattern.permute.xlu0 0
    %403 = vperm.xlu0 %402, %v399
    %v404 = vpop.permute.xlu0 %403
    %407 = vset.pattern.permute.xlu0 0
    %408 = vperm.xlu0 %407, %v400
    %v409 = vpop.permute.xlu0 %408
    %v411 = vmul.f32 %v397, %v404
    %v412 = vmul.f32 %v398, %v409
    %vm413 = vcmask 64512
    %v414 = vsel %vm413, %v411, 0.0
    %v415 = vsel %vm413, %v412, 0.0
    %v416 = vadd.f32 %v414, %v415
    %v417 = vrot.slane %v416, 4
    %v418 = vadd.f32 %v416, %v417
    %v419 = vrot.slane %v418, 2
    %v420 = vadd.f32 %v418, %v419
    %v421 = vrot.slane %v420, 1
    %v422 = vadd.f32 %v420, %v421
    %v423 = vld [vmem:[#allocation2] sm:$0x1]
    %425 = vset.pattern.permute.xlu0 0
    %426 = vperm.xlu0 %425, %v423
    %v427 = vpop.permute.xlu0 %426
    %v429 = vlaneseq
    %v430 = vshrl.u32 %v429, 7
    %v431 = vsub.s32 0, %v430
    %v432 = vrot.slane %v427, %v431
    %v433 = vadd.f32 %v422, %v432
    %vm434 = vcmask 57344
    %435 = vst.msk [vmem:[#allocation8] sm:$0x1] %vm434, %v433
    // Predicated region
    $region46: #{tpu_custom_call.1} parent=1 // pred_check
      _
    $region47: #{tpu_custom_call.1} parent=1 // pred_check_branch
      %437 = sbr.rel (0) target = $region49
    $region48: #{tpu_custom_call.1} parent=1 // pred_region
      %s439 = ssub.s32 16, 16
      %440 = vsyncadd [#allocation5], %s439
      %s442 = sshll.u32 [#allocation8], 4
      %s443 = int_to_ptr.vmem [resolvable:$true] %s442
      %445 = dma.vmem_to_hbm [thread:$0]  %s443, 16, %s9, [#allocation5]
    $region49: #{tpu_custom_call.1} parent=1 // pred_fallthru
      _
    // Predicated region
    $region50: #{tpu_custom_call.1} parent=1 // pred_check
      _
    $region51: #{tpu_custom_call.1} parent=1 // pred_check_branch
      %447 = sbr.rel (0) target = $region53
    $region52: #{tpu_custom_call.1} parent=1 // pred_region
      %448 = dma.done [#allocation5], 16
    $region53: #{tpu_custom_call.1} parent=1 // pred_fallthru
      _
    %449 = vsyncpa [#allocation4], 1
    %450 = vsyncpa [#allocation7], 1
    %451 = vsyncpa [#allocation5], 1

</llo_original>
